<compile_context>
chip_gen: v6e
topology: v6e:2x2x1
jax: 0.10.0
libtpu: 0.0.40
codegen_flags: <defaults>
</compile_context>

<pallas_src>
import functools

import jax
import jax.numpy as jnp
from jax.experimental import pallas as pl
from jax.experimental.pallas import tpu as pltpu


def _round_up(x, m):
    return (x + m - 1) // m * m


def _cdiv(a, b):
    return (a + b - 1) // b


# ---------------------------------------------------------------------------
# Kernels
# ---------------------------------------------------------------------------

def _swiglu_resident_kernel(x_ref, w1_ref, w3_ref, w2_ref, o_ref):
    """grid = (num_row_tiles,).  Full weight blocks have an invariant block
    index, so Pallas DMAs them exactly once and keeps them VMEM-resident;
    each grid step computes one row tile end-to-end."""
    x = x_ref[...]
    gate = jnp.dot(x, w1_ref[...], preferred_element_type=jnp.float32)
    non_gate = jnp.dot(x, w3_ref[...], preferred_element_type=jnp.float32)
    hidden = (gate * jax.nn.sigmoid(gate) * non_gate).astype(x_ref.dtype)
    o_ref[...] = jnp.dot(hidden, w2_ref[...],
                         preferred_element_type=jnp.float32).astype(o_ref.dtype)


def _swiglu_tiled_kernel(x_ref, w1_ref, w3_ref, w2_ref, o_ref, acc_ref):
    """grid = (num_row_tiles, num_ffn_tiles).  Axis 1 is the ffn reduction:
    each step computes (silu(x @ w1_j) * (x @ w3_j)) @ w2_j for one ffn slice
    and accumulates into a f32 VMEM scratch; the last j writes the output."""
    j = pl.program_id(1)

    @pl.when(j == 0)
    def _():
        acc_ref[...] = jnp.zeros_like(acc_ref)

    x = x_ref[...]
    gate = jnp.dot(x, w1_ref[...], preferred_element_type=jnp.float32)
    non_gate = jnp.dot(x, w3_ref[...], preferred_element_type=jnp.float32)
    # Match the Triton kernel: cast activations back to the input precision
    # before the second matmul (bf16 path); f32 stays f32.
    hidden = (gate * jax.nn.sigmoid(gate) * non_gate).astype(x_ref.dtype)
    acc_ref[...] += jnp.dot(hidden, w2_ref[...],
                            preferred_element_type=jnp.float32)

    @pl.when(j == pl.num_programs(1) - 1)
    def _():
        o_ref[...] = acc_ref[...].astype(o_ref.dtype)


# ---------------------------------------------------------------------------
# Tile / VMEM configuration
# ---------------------------------------------------------------------------

def _tpu_generation():
    try:
        kind = jax.devices()[0].device_kind.lower()
    except Exception:
        return None
    for gen in (7, 6, 5, 4):
        if f"v{gen}" in kind or f"tpu{gen}" in kind:
            return gen
    return None


def _tiled_vmem_bytes(tm, tf, d_m, itemsize):
    """Double-buffered working set of the tiled kernel (lane/sublane padded),
    including the in-kernel f32 gate/non_gate/hidden temporaries."""
    d_m_lane = _round_up(d_m, 128)
    d_m_sub = _round_up(d_m, 8)
    tf_lane = _round_up(tf, 128)
    x_blk = tm * d_m_lane * itemsize
    w13_blk = 2 * d_m_sub * tf_lane * itemsize
    w2_blk = _round_up(tf, 8) * d_m_lane * itemsize
    out_blk = tm * d_m_lane * itemsize
    acc = tm * d_m_lane * 4
    interm = 4 * tm * tf_lane * 4
    return 2 * (x_blk + w13_blk + w2_blk + out_blk) + acc + interm


def _resident_vmem_bytes(tm, d_m, d_ffn, itemsize):
    """Working set of the weight-resident variant (weights counted with the
    default double-buffer factor, i.e. ~6*d_m*d_ffn*itemsize, to stay safe)."""
    d_m_lane = _round_up(d_m, 128)
    d_m_sub = _round_up(d_m, 8)
    f_lane = _round_up(d_ffn, 128)
    x_blk = tm * d_m_lane * itemsize
    w13 = 2 * d_m_sub * f_lane * itemsize
    w2 = _round_up(d_ffn, 8) * d_m_lane * itemsize
    out_blk = tm * d_m_lane * itemsize
    interm = 3 * tm * f_lane * 4 + tm * d_m_lane * 4
    return 2 * (x_blk + w13 + w2 + out_blk) + interm


def _auto_config(M, d_m, d_ffn, itemsize, tm_user, tf_user):
    gen = _tpu_generation()
    if gen is not None and gen >= 7:
        # v7x: 64 MiB VMEM per TensorCore, ~3.2 TB/s HBM, 2 TCs per chip.
        vmem_cap, hard_cap, num_cores = 44 << 20, 60 << 20, 2
        tm_target, tf_target = 512, 256
    elif gen in (5, 6):
        # v5e / v6e: 128 MiB VMEM, 1 TensorCore.
        vmem_cap, hard_cap, num_cores = 96 << 20, 112 << 20, 1
        tm_target = 1024 if itemsize <= 2 else 512
        tf_target = 512
    else:
        vmem_cap, hard_cap, num_cores = 44 << 20, 60 << 20, 1
        tm_target, tf_target = 256, 256

    # --- row tile -----------------------------------------------------------
    tm = tm_target if tm_user is None else max(8, _round_up(tm_user, 8))
    tm = min(tm, _round_up(M, 8))
    if tm_user is None and num_cores >= 2 and M > 8:
        # Keep >= num_cores row tiles so the 'parallel' axis can actually be
        # split across both v7x TensorCores instead of collapsing to one tile.
        while tm > 8 and _cdiv(max(M, tm), tm) < num_cores:
            tm = max(8, _round_up(tm // 2, 8))

    # --- ffn tile / variant selection ---------------------------------------
    tf = tf_target if tf_user is None else tf_user
    tf = min(_round_up(max(tf, 1), 128), _round_up(d_ffn, 128))

    if tf_user is None and _resident_vmem_bytes(tm, d_m, d_ffn, itemsize) <= vmem_cap:
        mode = "resident"
        need = _resident_vmem_bytes(tm, d_m, d_ffn, itemsize)
    else:
        mode = "tiled"
        # Shrink auto-chosen tiles until the working set fits the budget
        # (d_m-aware, so large-d_m / f32 shapes still compile on v7x).
        while _tiled_vmem_bytes(tm, tf, d_m, itemsize) > vmem_cap:
            if tf_user is None and tf > 128:
                tf = max(128, (tf // 2) // 128 * 128)
            elif tm_user is None and tm > 8:
                tm = max(8, _round_up(tm // 2, 8))
            else:
                break
        need = _tiled_vmem_bytes(tm, tf, d_m, itemsize)

    # Never declare less VMEM than the working set actually needs.
    vmem_limit = max(32 << 20, min(hard_cap, int(need * 1.3) + (2 << 20)))
    if vmem_limit < need:
        vmem_limit = int(need) + (2 << 20)
    return mode, tm, tf, int(vmem_limit)


# ---------------------------------------------------------------------------
# Wrapper
# ---------------------------------------------------------------------------

@functools.partial(jax.jit, static_argnames=("tm", "tf"))
def fused_swiglu_forward(x, w1, w2, w3, *, tm=None, tf=None):
    """x: [B, S, d_m]; w1, w3: [d_m, d_ffn]; w2: [d_ffn, d_m] -> [B, S, d_m]."""
    B, S, d_m = x.shape
    d_ffn = w1.shape[1]
    M = B * S
    itemsize = jnp.dtype(x.dtype).itemsize

    mode, tm, tf, vmem_limit = _auto_config(M, d_m, d_ffn, itemsize, tm, tf)

    # Row handling: when M < tm (tiny batches) pad by at most 7 rows to the
    # next sublane multiple; otherwise keep M exactly — the partial last row
    # tile is masked by Pallas (no full-activation pad/copy through HBM).
    M_p = max(M, tm)
    grid_m = _cdiv(M_p, tm)
    x2d = x.reshape(M, d_m)
    if M_p != M:
        x2d = jnp.pad(x2d, ((0, M_p - M), (0, 0)))

    flops = 6 * M * d_m * d_ffn

    if mode == "resident":
        cost = pl.CostEstimate(
            flops=flops, transcendentals=M * d_ffn,
            bytes_accessed=(2 * M * d_m + 3 * d_m * d_ffn) * itemsize)
        out2d = pl.pallas_call(
            _swiglu_resident_kernel,
            out_shape=jax.ShapeDtypeStruct((M_p, d_m), x.dtype),
            grid=(grid_m,),
            in_specs=[
                pl.BlockSpec((tm, d_m), lambda i: (i, 0)),
                pl.BlockSpec((d_m, d_ffn), lambda i: (0, 0)),   # w1, resident
                pl.BlockSpec((d_m, d_ffn), lambda i: (0, 0)),   # w3, resident
                pl.BlockSpec((d_ffn, d_m), lambda i: (0, 0)),   # w2, resident
            ],
            out_specs=pl.BlockSpec((tm, d_m), lambda i: (i, 0)),
            compiler_params=pltpu.CompilerParams(
                dimension_semantics=("parallel",),
                vmem_limit_bytes=vmem_limit),
            cost_estimate=cost,
        )(x2d, w1, w3, w2)
    else:
        F_p = _round_up(d_ffn, tf)
        nf = F_p // tf
        w1p, w3p, w2p = w1, w3, w2
        if F_p != d_ffn:
            # Zero-padding the ffn axis is sound: silu(0) * 0 adds nothing.
            w1p = jnp.pad(w1, ((0, 0), (0, F_p - d_ffn)))
            w3p = jnp.pad(w3, ((0, 0), (0, F_p - d_ffn)))
            w2p = jnp.pad(w2, ((0, F_p - d_ffn), (0, 0)))
        cost = pl.CostEstimate(
            flops=flops, transcendentals=M * d_ffn,
            bytes_accessed=(2 * M * d_m + grid_m * 3 * d_m * F_p) * itemsize)
        out2d = pl.pallas_call(
            _swiglu_tiled_kernel,
            out_shape=jax.ShapeDtypeStruct((M_p, d_m), x.dtype),
            grid=(grid_m, nf),
            in_specs=[
                pl.BlockSpec((tm, d_m), lambda i, j: (i, 0)),   # x row tile
                pl.BlockSpec((d_m, tf), lambda i, j: (0, j)),   # w1 ffn tile
                pl.BlockSpec((d_m, tf), lambda i, j: (0, j)),   # w3 ffn tile
                pl.BlockSpec((tf, d_m), lambda i, j: (j, 0)),   # w2 ffn tile
            ],
            out_specs=pl.BlockSpec((tm, d_m), lambda i, j: (i, 0)),
            scratch_shapes=[pltpu.VMEM((tm, d_m), jnp.float32)],
            compiler_params=pltpu.CompilerParams(
                dimension_semantics=("parallel", "arbitrary"),
                vmem_limit_bytes=vmem_limit),
            cost_estimate=cost,
        )(x2d, w1p, w3p, w2p)

    if M_p != M:
        out2d = out2d[:M]
    return out2d.reshape(B, S, d_m)


# ---------------------------------------------------------------------------
# Self-test
# ---------------------------------------------------------------------------

def _trunc_normal(key, shape, std=0.02, dtype=jnp.float32):
    # Matches torch.nn.init.trunc_normal_(mean=0, std=0.02): truncation at +-2 std.
    return (jax.random.truncated_normal(key, -2.0, 2.0, shape, jnp.float32)
            * std).astype(dtype)


def _reference(x, w1, w2, w3):
    B, S, d_m = x.shape
    x2d = x.reshape(-1, d_m).astype(jnp.float32)
    gate = x2d @ w1.astype(jnp.float32)
    out = ((gate * jax.nn.sigmoid(gate)) * (x2d @ w3.astype(jnp.float32))) \
        @ w2.astype(jnp.float32)
    return out.reshape(B, S, d_m).astype(x.dtype)


def _make(key, B, S, d_m, d_ffn, dtype):
    kx, k1, k2, k3 = jax.random.split(key, 4)
    x = jax.random.normal(kx, (B, S, d_m), dtype=jnp.float32).astype(dtype)
    w1 = _trunc_normal(k1, (d_m, d_ffn), dtype=dtype)
    w2 = _trunc_normal(k2, (d_ffn, d_m), dtype=dtype)
    w3 = _trunc_normal(k3, (d_m, d_ffn), dtype=dtype)
    return x, w1, w2, w3


if __name__ == "__main__":
    key = jax.random.PRNGKey(0)
    k1, k2, k3, k4 = jax.random.split(key, 4)

    # 1) Small shape, auto config (weight-resident variant on any TPU gen).
    x, w1, w2, w3 = _make(k1, 2, 8, 32, 256, jnp.float32)
    out = jax.block_until_ready(fused_swiglu_forward(x, w1, w2, w3))
    ref = _reference(x, w1, w2, w3)
    assert out.shape == x.shape and out.dtype == x.dtype
    assert jnp.allclose(out, ref, atol=1e-4, rtol=1e-3), "mismatch (auto/resident)"

    # 2) Ragged M (padded by <= 7 rows) + ragged d_ffn on the tiled path.
    x, w1, w2, w3 = _make(k2, 2, 5, 32, 384, jnp.float32)
    out = jax.block_until_ready(fused_swiglu_forward(x, w1, w2, w3, tm=16, tf=256))
    ref = _reference(x, w1, w2, w3)
    assert out.shape == x.shape and out.dtype == x.dtype
    assert jnp.allclose(out, ref, atol=1e-4, rtol=1e-3), "mismatch (ragged ffn)"

    # 3) Tiled path with a partial last row tile (M not a multiple of tm).
    x, w1, w2, w3 = _make(k3, 2, 24, 128, 256, jnp.float32)
    out = jax.block_until_ready(fused_swiglu_forward(x, w1, w2, w3, tm=32, tf=128))
    ref = _reference(x, w1, w2, w3)
    assert out.shape == x.shape and out.dtype == x.dtype
    assert jnp.allclose(out, ref, atol=1e-4, rtol=1e-3), "mismatch (partial tile)"

    # 4) bf16 path (hidden re-cast to bf16 before the second matmul).
    x, w1, w2, w3 = _make(k4, 2, 16, 64, 256, jnp.bfloat16)
    out = jax.block_until_ready(fused_swiglu_forward(x, w1, w2, w3))
    ref = _reference(x, w1, w2, w3)
    assert out.shape == x.shape and out.dtype == jnp.bfloat16
    assert jnp.allclose(out.astype(jnp.float32), ref.astype(jnp.float32),
                        atol=5e-3, rtol=5e-2), "mismatch (bf16)"

    # TODO(synk): backward pass (_bwd Triton kernels: matmul_dx / dw1_dw3 / dw2)
    # not implemented — the module's forward() only needs the fused forward.
    print("KERNEL_OK")
</pallas_src>

<mosaic_0001>
module attributes {stable_mosaic.version = 11 : i64} {
  func.func @_swiglu_resident_kernel(%arg0: i32, %arg1: memref<16x32xf32, #tpu.memory_space<vmem>>, %arg2: memref<32x256xf32, #tpu.memory_space<vmem>>, %arg3: memref<32x256xf32, #tpu.memory_space<vmem>>, %arg4: memref<256x32xf32, #tpu.memory_space<vmem>>, %arg5: memref<16x32xf32, #tpu.memory_space<vmem>>) attributes {dimension_semantics = [#tpu.dimension_semantics<parallel>], iteration_bounds = array<i64: 1>, scalar_prefetch = 0 : i64, scratch_operands = 0 : i64, tpu.core_type = #tpu.core_type<tc>, window_params = [{transform_indices = @transform_0, window_bounds = array<i64: 16, 32>}, {pipeline_mode = #tpu.pipeline_mode<synchronous>, transform_indices = @transform_1, window_bounds = array<i64: 32, 256>}, {pipeline_mode = #tpu.pipeline_mode<synchronous>, transform_indices = @transform_2, window_bounds = array<i64: 32, 256>}, {pipeline_mode = #tpu.pipeline_mode<synchronous>, transform_indices = @transform_3, window_bounds = array<i64: 256, 32>}, {transform_indices = @transform_4, window_bounds = array<i64: 16, 32>}]} {
    %c0 = arith.constant 0 : index
    %c0_0 = arith.constant 0 : index
    %0 = vector.load %arg1[%c0, %c0_0] : memref<16x32xf32, #tpu.memory_space<vmem>>, vector<16x32xf32>
    %c0_1 = arith.constant 0 : index
    %c0_2 = arith.constant 0 : index
    %1 = vector.load %arg2[%c0_1, %c0_2] : memref<32x256xf32, #tpu.memory_space<vmem>>, vector<32x256xf32>
    %cst = arith.constant dense<0.000000e+00> : vector<16x256xf32>
    %2 = tpu.matmul %0, %1, %cst {dimension_numbers = #tpu.dot_dimension_numbers<[1], [0], [0], [1], [0, 0, 1, 1], [], []>} : vector<16x32xf32>, vector<32x256xf32>, vector<16x256xf32> -> vector<16x256xf32>
    %c0_3 = arith.constant 0 : index
    %c0_4 = arith.constant 0 : index
    %3 = vector.load %arg3[%c0_3, %c0_4] : memref<32x256xf32, #tpu.memory_space<vmem>>, vector<32x256xf32>
    %cst_5 = arith.constant dense<0.000000e+00> : vector<16x256xf32>
    %4 = tpu.matmul %0, %3, %cst_5 {dimension_numbers = #tpu.dot_dimension_numbers<[1], [0], [0], [1], [0, 0, 1, 1], [], []>} : vector<16x32xf32>, vector<32x256xf32>, vector<16x256xf32> -> vector<16x256xf32>
    %5 = arith.negf %2 : vector<16x256xf32>
    %6 = math.exp %5 : vector<16x256xf32>
    %cst_6 = arith.constant 1.000000e+00 : f32
    %7 = vector.broadcast %cst_6 : f32 to vector<16x256xf32>
    %8 = arith.addf %7, %6 : vector<16x256xf32>
    %9 = arith.divf %7, %8 : vector<16x256xf32>
    %10 = arith.mulf %2, %9 : vector<16x256xf32>
    %11 = arith.mulf %10, %4 : vector<16x256xf32>
    %c0_7 = arith.constant 0 : index
    %c0_8 = arith.constant 0 : index
    %12 = vector.load %arg4[%c0_7, %c0_8] : memref<256x32xf32, #tpu.memory_space<vmem>>, vector<256x32xf32>
    %cst_9 = arith.constant dense<0.000000e+00> : vector<16x32xf32>
    %13 = tpu.matmul %11, %12, %cst_9 {dimension_numbers = #tpu.dot_dimension_numbers<[1], [0], [0], [1], [0, 0, 1, 1], [], []>} : vector<16x256xf32>, vector<256x32xf32>, vector<16x32xf32> -> vector<16x32xf32>
    %c0_10 = arith.constant 0 : index
    %c0_11 = arith.constant 0 : index
    %14 = vector.load %arg5[%c0_10, %c0_11] : memref<16x32xf32, #tpu.memory_space<vmem>>, vector<16x32xf32>
    tpu.vector_store %arg5[%c0_10, %c0_11], %13 {strides = array<i32>} : memref<16x32xf32, #tpu.memory_space<vmem>>, vector<16x32xf32>,
    return
  }
  func.func @transform_0(%arg0: i32) -> (i32, i32) {
    %c0_i32 = arith.constant 0 : i32
    %c0_i32_0 = arith.constant 0 : i32
    return %arg0, %c0_i32 : i32, i32
  }
  func.func @transform_1(%arg0: i32) -> (i32, i32) {
    %c0_i32 = arith.constant 0 : i32
    %c0_i32_0 = arith.constant 0 : i32
    %c0_i32_1 = arith.constant 0 : i32
    return %c0_i32, %c0_i32_0 : i32, i32
  }
  func.func @transform_2(%arg0: i32) -> (i32, i32) {
    %c0_i32 = arith.constant 0 : i32
    %c0_i32_0 = arith.constant 0 : i32
    %c0_i32_1 = arith.constant 0 : i32
    return %c0_i32, %c0_i32_0 : i32, i32
  }
  func.func @transform_3(%arg0: i32) -> (i32, i32) {
    %c0_i32 = arith.constant 0 : i32
    %c0_i32_0 = arith.constant 0 : i32
    %c0_i32_1 = arith.constant 0 : i32
    return %c0_i32, %c0_i32_0 : i32, i32
  }
  func.func @transform_4(%arg0: i32) -> (i32, i32) {
    %c0_i32 = arith.constant 0 : i32
    %c0_i32_0 = arith.constant 0 : i32
    return %arg0, %c0_i32 : i32, i32
  }
}

</mosaic_0001>

<llo_original>
// kernel: fused_swiglu_forward.1
$region0: #{fused_swiglu_forward.1}
  #allocation0 [shape = 'u32[]', space=smem, size = 0x4, offset = 0x4, fixed_abs, tag = 'smem constant byte address 0x4 - core index']
  #allocation1 [shape = 'u32[144,128]{1,0:T(1,128)}', space=vmem, size = 0x12000, scoped, tag = 'internal scratch']
  %s0 = inlined_call_operand.vmem [shape: f32[16,32], index: 0, kind: input, shape index: {}]
  %s1 = inlined_call_operand.vmem [shape: f32[32,256], index: 1, kind: input, shape index: {}]
  %s2 = inlined_call_operand.vmem [shape: f32[32,256], index: 2, kind: input, shape index: {}]
  %s3 = inlined_call_operand.vmem [shape: f32[256,32], index: 3, kind: input, shape index: {}]
  %s4 = inlined_call_operand.hbm [shape: f32[16,32], index: 4, kind: output, shape index: {}]
  %s5 = sld [smem:[#allocation0]]
  $region26: #{fused_swiglu_forward.1} parent=0
    _
  %s7 = ssub.s32 1, %s5
  %s8 = scalar_select 0, %s7, %s5
  $region1: #{fused_swiglu_forward.1} parent=0
    #allocation2 [shape = 'u8[8192]{0}', space=vmem, size = 0x2000, scoped, tag = 'output window, operand 0, single buffered']
    #allocation3 [shape = 's32[1]{0}', space=sflag, size = 0x4, scoped, tag = 'scoped memory for fused_swiglu_forward.1']
    %9 = vsyncpa [#allocation3], 0
    // Predicated region
    $region2: #{fused_swiglu_forward.1} parent=1 // pred_check
      _
    $region3: #{fused_swiglu_forward.1} parent=1 // pred_check_branch
      %11 = sbr.rel (0) target = $region5
    $region4: #{fused_swiglu_forward.1} parent=1 // pred_region
      _
    $region5: #{fused_swiglu_forward.1} parent=1 // pred_fallthru
      _
    // Predicated region
    $region6: #{fused_swiglu_forward.1} parent=1 // pred_check
      _
    $region7: #{fused_swiglu_forward.1} parent=1 // pred_check_branch
      %13 = sbr.rel (0) target = $region9
    $region8: #{fused_swiglu_forward.1} parent=1 // pred_region
      _
    $region9: #{fused_swiglu_forward.1} parent=1 // pred_fallthru
      _
    // Predicated region
    $region10: #{fused_swiglu_forward.1} parent=1 // pred_check
      _
    $region11: #{fused_swiglu_forward.1} parent=1 // pred_check_branch
      %15 = sbr.rel (0) target = $region13
    $region12: #{fused_swiglu_forward.1} parent=1 // pred_region
      _
    $region13: #{fused_swiglu_forward.1} parent=1 // pred_fallthru
      _
    // Predicated region
    $region14: #{fused_swiglu_forward.1} parent=1 // pred_check
      _
    $region15: #{fused_swiglu_forward.1} parent=1 // pred_check_branch
      %17 = sbr.rel (0) target = $region17
    $region16: #{fused_swiglu_forward.1} parent=1 // pred_region
      _
    $region17: #{fused_swiglu_forward.1} parent=1 // pred_fallthru
      _
    %v18 = vld [vmem:[%s0] sm:$0xff]
    %v19 = vld [vmem:[%s0 + $0x8] sm:$0xff]
    %v20 = vld [vmem:[%s1] sm:$0xff]
    %v21 = vld [vmem:[%s1 + $0x8] sm:$0xff]
    %v22 = vld [vmem:[%s1 + $0x10] sm:$0xff]
    %v23 = vld [vmem:[%s1 + $0x18] sm:$0xff]
    %v24 = vld [vmem:[%s1 + $0x20] sm:$0xff]
    %v25 = vld [vmem:[%s1 + $0x28] sm:$0xff]
    %v26 = vld [vmem:[%s1 + $0x30] sm:$0xff]
    %v27 = vld [vmem:[%s1 + $0x38] sm:$0xff]
    %vm28 = vcmask 261120
    %v30 = vsel %vm28, %v18, 0
    %v33 = vsel %vm28, %v19, 0
    %35 = vmatprep.subr.mxu0 0.0
    %36 = vmatpush1.msra.mxu0 0.0
    %37 = vmatprep.subr.mxu0 0.0
    %38 = vmatpush1.msra.mxu0 0.0
    %39 = vmatprep.subr.mxu0 0.0
    %40 = vmatpush1.msra.mxu0 0.0
    %41 = vmatprep.subr.mxu0 0.0
    %42 = vmatpush1.msra.mxu0 0.0
    %43 = vmatprep.subr.mxu0 0.0
    %44 = vmatpush1.msra.mxu0 0.0
    %45 = vmatprep.subr.mxu0 0.0
    %46 = vmatpush1.msra.mxu0 0.0
    %47 = vmatprep.subr.mxu0 0.0
    %48 = vmatpush1.msra.mxu0 0.0
    %49 = vmatprep.subr.mxu0 0.0
    %50 = vmatpush1.msra.mxu0 0.0
    %51 = vmatprep.subr.mxu0 0.0
    %52 = vmatpush1.msra.mxu0 0.0
    %53 = vmatprep.subr.mxu0 0.0
    %54 = vmatpush1.msra.mxu0 0.0
    %55 = vmatprep.subr.mxu0 0.0
    %56 = vmatpush1.msra.mxu0 0.0
    %57 = vmatprep.subr.mxu0 0.0
    %58 = vmatpush1.msra.mxu0 0.0
    %59 = vmatprep.subr.mxu0 %v27
    %60 = vmatpush1.msra.mxu0 %v26
    %61 = vmatprep.subr.mxu0 %v25
    %62 = vmatpush1.msra.mxu0 %v24
    %63 = vmatprep.subr.mxu0 %v23
    %64 = vmatpush1.msra.mxu0 %v22
    %65 = vmatprep.subr.mxu0 %v21
    %66 = vmatpush1.msra.mxu0 %v20
    %67 = vmatprep.subr.mxu0 0.0
    %68 = vmatpush2.msra.mxu0 0.0
    %69 = vmatprep.subr.mxu0 0.0
    %70 = vmatpush2.msra.mxu0 0.0
    %71 = vmatprep.subr.mxu0 0.0
    %72 = vmatpush2.msra.mxu0 0.0
    %73 = vmatprep.subr.mxu0 0.0
    %74 = vmatpush2.msra.mxu0 0.0
    %75 = vmatprep.subr.mxu0 0.0
    %76 = vmatpush2.msra.mxu0 0.0
    %77 = vmatprep.subr.mxu0 0.0
    %78 = vmatpush2.msra.mxu0 0.0
    %79 = vmatprep.subr.mxu0 0.0
    %80 = vmatpush2.msra.mxu0 0.0
    %81 = vmatprep.subr.mxu0 0.0
    %82 = vmatpush2.msra.mxu0 0.0
    %83 = vmatprep.subr.mxu0 0.0
    %84 = vmatpush2.msra.mxu0 0.0
    %85 = vmatprep.subr.mxu0 0.0
    %86 = vmatpush2.msra.mxu0 0.0
    %87 = vmatprep.subr.mxu0 0.0
    %88 = vmatpush2.msra.mxu0 0.0
    %89 = vmatprep.subr.mxu0 0.0
    %90 = vmatpush2.msra.mxu0 0.0
    %91 = vmatprep.subr.mxu0 0.0
    %92 = vmatpush2.msra.mxu0 0.0
    %93 = vmatprep.subr.mxu0 0.0
    %94 = vmatpush2.msra.mxu0 0.0
    %95 = vmatprep.subr.mxu0 0.0
    %96 = vmatpush2.msra.mxu0 0.0
    %97 = vmatprep.subr.mxu0 0.0
    %98 = vmatpush2.msra.mxu0 0.0
    %99 = vmatprep.mubr.f32.mxu0 0.0
    %100 = vmatmul.mubr.f32.gmra.mxu0 %v30
    %v101 = vpop.f32.mrf.mxu0
    %v102 = vadd.f32 0.0, %v101
    %v103 = vpop.f32.mrf.mxu0
    %v104 = vadd.f32 0.0, %v103
    %105 = vmatprep.mubr.f32.mxu0 0.0
    %106 = vmatmul.mubr.f32.gmra.mxu0 %v33
    %v107 = vpop.f32.mrf.mxu0
    %v108 = vadd.f32 0.0, %v107
    %v109 = vpop.f32.mrf.mxu0
    %v110 = vadd.f32 0.0, %v109
    %111 = vdwg.mxu0
    %v112 = vld [vmem:[%s2] sm:$0xff]
    %v113 = vld [vmem:[%s2 + $0x8] sm:$0xff]
    %v114 = vld [vmem:[%s2 + $0x10] sm:$0xff]
    %v115 = vld [vmem:[%s2 + $0x18] sm:$0xff]
    %v116 = vld [vmem:[%s2 + $0x20] sm:$0xff]
    %v117 = vld [vmem:[%s2 + $0x28] sm:$0xff]
    %v118 = vld [vmem:[%s2 + $0x30] sm:$0xff]
    %v119 = vld [vmem:[%s2 + $0x38] sm:$0xff]
    %120 = vmatprep.subr.mxu0 0.0
    %121 = vmatpush1.msra.mxu0 0.0
    %122 = vmatprep.subr.mxu0 0.0
    %123 = vmatpush1.msra.mxu0 0.0
    %124 = vmatprep.subr.mxu0 0.0
    %125 = vmatpush1.msra.mxu0 0.0
    %126 = vmatprep.subr.mxu0 0.0
    %127 = vmatpush1.msra.mxu0 0.0
    %128 = vmatprep.subr.mxu0 0.0
    %129 = vmatpush1.msra.mxu0 0.0
    %130 = vmatprep.subr.mxu0 0.0
    %131 = vmatpush1.msra.mxu0 0.0
    %132 = vmatprep.subr.mxu0 0.0
    %133 = vmatpush1.msra.mxu0 0.0
    %134 = vmatprep.subr.mxu0 0.0
    %135 = vmatpush1.msra.mxu0 0.0
    %136 = vmatprep.subr.mxu0 0.0
    %137 = vmatpush1.msra.mxu0 0.0
    %138 = vmatprep.subr.mxu0 0.0
    %139 = vmatpush1.msra.mxu0 0.0
    %140 = vmatprep.subr.mxu0 0.0
    %141 = vmatpush1.msra.mxu0 0.0
    %142 = vmatprep.subr.mxu0 0.0
    %143 = vmatpush1.msra.mxu0 0.0
    %144 = vmatprep.subr.mxu0 %v119
    %145 = vmatpush1.msra.mxu0 %v118
    %146 = vmatprep.subr.mxu0 %v117
    %147 = vmatpush1.msra.mxu0 %v116
    %148 = vmatprep.subr.mxu0 %v115
    %149 = vmatpush1.msra.mxu0 %v114
    %150 = vmatprep.subr.mxu0 %v113
    %151 = vmatpush1.msra.mxu0 %v112
    %152 = vmatprep.subr.mxu0 0.0
    %153 = vmatpush2.msra.mxu0 0.0
    %154 = vmatprep.subr.mxu0 0.0
    %155 = vmatpush2.msra.mxu0 0.0
    %156 = vmatprep.subr.mxu0 0.0
    %157 = vmatpush2.msra.mxu0 0.0
    %158 = vmatprep.subr.mxu0 0.0
    %159 = vmatpush2.msra.mxu0 0.0
    %160 = vmatprep.subr.mxu0 0.0
    %161 = vmatpush2.msra.mxu0 0.0
    %162 = vmatprep.subr.mxu0 0.0
    %163 = vmatpush2.msra.mxu0 0.0
    %164 = vmatprep.subr.mxu0 0.0
    %165 = vmatpush2.msra.mxu0 0.0
    %166 = vmatprep.subr.mxu0 0.0
    %167 = vmatpush2.msra.mxu0 0.0
    %168 = vmatprep.subr.mxu0 0.0
    %169 = vmatpush2.msra.mxu0 0.0
    %170 = vmatprep.subr.mxu0 0.0
    %171 = vmatpush2.msra.mxu0 0.0
    %172 = vmatprep.subr.mxu0 0.0
    %173 = vmatpush2.msra.mxu0 0.0
    %174 = vmatprep.subr.mxu0 0.0
    %175 = vmatpush2.msra.mxu0 0.0
    %176 = vmatprep.subr.mxu0 0.0
    %177 = vmatpush2.msra.mxu0 0.0
    %178 = vmatprep.subr.mxu0 0.0
    %179 = vmatpush2.msra.mxu0 0.0
    %180 = vmatprep.subr.mxu0 0.0
    %181 = vmatpush2.msra.mxu0 0.0
    %182 = vmatprep.subr.mxu0 0.0
    %183 = vmatpush2.msra.mxu0 0.0
    %184 = vmatprep.mubr.f32.mxu0 0.0
    %185 = vmatmul.mubr.f32.gmra.mxu0 %v30
    %v186 = vpop.f32.mrf.mxu0
    %v187 = vadd.f32 0.0, %v186
    %v188 = vpop.f32.mrf.mxu0
    %v189 = vadd.f32 0.0, %v188
    %190 = vmatprep.mubr.f32.mxu0 0.0
    %191 = vmatmul.mubr.f32.gmra.mxu0 %v33
    %v192 = vpop.f32.mrf.mxu0
    %v193 = vadd.f32 0.0, %v192
    %v194 = vpop.f32.mrf.mxu0
    %v195 = vadd.f32 0.0, %v194
    %196 = vdwg.mxu0
    %v197 = vxor.u32 %v102, 2147483648
    %v198 = vxor.u32 %v104, 2147483648
    %v199 = vxor.u32 %v108, 2147483648
    %v200 = vxor.u32 %v110, 2147483648
    %v201 = vmul.f32 %v197, 1.442695
    %v202 = vpow.pop %v201
    %v203 = vmul.f32 %v198, 1.442695
    %v204 = vpow.pop %v203
    %v205 = vmul.f32 %v199, 1.442695
    %v206 = vpow.pop %v205
    %v207 = vmul.f32 %v200, 1.442695
    %v208 = vpow.pop %v207
    %v209 = vadd.f32 %v202, 1.0
    %v210 = vadd.f32 %v204, 1.0
    %v211 = vadd.f32 %v206, 1.0
    %v212 = vadd.f32 %v208, 1.0
    %v213 = vrcp.pop %v209
    %v214 = vmul.f32 1.0, %v213
    %v215 = vrcp.pop %v210
    %v216 = vmul.f32 1.0, %v215
    %v217 = vrcp.pop %v211
    %v218 = vmul.f32 1.0, %v217
    %v219 = vrcp.pop %v212
    %v220 = vmul.f32 1.0, %v219
    %v221 = vmul.f32 %v102, %v214
    %v222 = vmul.f32 %v104, %v216
    %v223 = vmul.f32 %v108, %v218
    %v224 = vmul.f32 %v110, %v220
    %v225 = vmul.f32 %v221, %v187
    %v226 = vmul.f32 %v222, %v189
    %v227 = vmul.f32 %v223, %v193
    %v228 = vmul.f32 %v224, %v195
    %v229 = vld [vmem:[%s3] sm:$0xff]
    %v230 = vld [vmem:[%s3 + $0x8] sm:$0xff]
    %v231 = vld [vmem:[%s3 + $0x10] sm:$0xff]
    %v232 = vld [vmem:[%s3 + $0x18] sm:$0xff]
    %v233 = vld [vmem:[%s3 + $0x20] sm:$0xff]
    %v234 = vld [vmem:[%s3 + $0x28] sm:$0xff]
    %v235 = vld [vmem:[%s3 + $0x30] sm:$0xff]
    %v236 = vld [vmem:[%s3 + $0x38] sm:$0xff]
    %v237 = vld [vmem:[%s3 + $0x40] sm:$0xff]
    %v238 = vld [vmem:[%s3 + $0x48] sm:$0xff]
    %v239 = vld [vmem:[%s3 + $0x50] sm:$0xff]
    %v240 = vld [vmem:[%s3 + $0x58] sm:$0xff]
    %v241 = vld [vmem:[%s3 + $0x60] sm:$0xff]
    %v242 = vld [vmem:[%s3 + $0x68] sm:$0xff]
    %v243 = vld [vmem:[%s3 + $0x70] sm:$0xff]
    %v244 = vld [vmem:[%s3 + $0x78] sm:$0xff]
    %v245 = vld [vmem:[%s3 + $0x80] sm:$0xff]
    %v246 = vld [vmem:[%s3 + $0x88] sm:$0xff]
    %v247 = vld [vmem:[%s3 + $0x90] sm:$0xff]
    %v248 = vld [vmem:[%s3 + $0x98] sm:$0xff]
    %v249 = vld [vmem:[%s3 + $0xa0] sm:$0xff]
    %v250 = vld [vmem:[%s3 + $0xa8] sm:$0xff]
    %v251 = vld [vmem:[%s3 + $0xb0] sm:$0xff]
    %v252 = vld [vmem:[%s3 + $0xb8] sm:$0xff]
    %v253 = vld [vmem:[%s3 + $0xc0] sm:$0xff]
    %v254 = vld [vmem:[%s3 + $0xc8] sm:$0xff]
    %v255 = vld [vmem:[%s3 + $0xd0] sm:$0xff]
    %v256 = vld [vmem:[%s3 + $0xd8] sm:$0xff]
    %v257 = vld [vmem:[%s3 + $0xe0] sm:$0xff]
    %v258 = vld [vmem:[%s3 + $0xe8] sm:$0xff]
    %v259 = vld [vmem:[%s3 + $0xf0] sm:$0xff]
    %v260 = vld [vmem:[%s3 + $0xf8] sm:$0xff]
    %261 = vmatprep.subr.mxu0 0.0
    %262 = vmatpush1.msra.mxu0 %v244
    %263 = vmatprep.subr.mxu0 0.0
    %264 = vmatpush1.msra.mxu0 %v243
    %265 = vmatprep.subr.mxu0 0.0
    %266 = vmatpush1.msra.mxu0 %v242
    %267 = vmatprep.subr.mxu0 0.0
    %268 = vmatpush1.msra.mxu0 %v241
    %269 = vmatprep.subr.mxu0 0.0
    %270 = vmatpush1.msra.mxu0 %v240
    %271 = vmatprep.subr.mxu0 0.0
    %272 = vmatpush1.msra.mxu0 %v239
    %273 = vmatprep.subr.mxu0 0.0
    %274 = vmatpush1.msra.mxu0 %v238
    %275 = vmatprep.subr.mxu0 0.0
    %276 = vmatpush1.msra.mxu0 %v237
    %277 = vmatprep.subr.mxu0 0.0
    %278 = vmatpush1.msra.mxu0 %v236
    %279 = vmatprep.subr.mxu0 0.0
    %280 = vmatpush1.msra.mxu0 %v235
    %281 = vmatprep.subr.mxu0 0.0
    %282 = vmatpush1.msra.mxu0 %v234
    %283 = vmatprep.subr.mxu0 0.0
    %284 = vmatpush1.msra.mxu0 %v233
    %285 = vmatprep.subr.mxu0 0.0
    %286 = vmatpush1.msra.mxu0 %v232
    %287 = vmatprep.subr.mxu0 0.0
    %288 = vmatpush1.msra.mxu0 %v231
    %289 = vmatprep.subr.mxu0 0.0
    %290 = vmatpush1.msra.mxu0 %v230
    %291 = vmatprep.subr.mxu0 0.0
    %292 = vmatpush1.msra.mxu0 %v229
    %293 = vmatprep.subr.mxu0 0.0
    %294 = vmatpush2.msra.mxu0 %v260
    %295 = vmatprep.subr.mxu0 0.0
    %296 = vmatpush2.msra.mxu0 %v259
    %297 = vmatprep.subr.mxu0 0.0
    %298 = vmatpush2.msra.mxu0 %v258
    %299 = vmatprep.subr.mxu0 0.0
    %300 = vmatpush2.msra.mxu0 %v257
    %301 = vmatprep.subr.mxu0 0.0
    %302 = vmatpush2.msra.mxu0 %v256
    %303 = vmatprep.subr.mxu0 0.0
    %304 = vmatpush2.msra.mxu0 %v255
    %305 = vmatprep.subr.mxu0 0.0
    %306 = vmatpush2.msra.mxu0 %v254
    %307 = vmatprep.subr.mxu0 0.0
    %308 = vmatpush2.msra.mxu0 %v253
    %309 = vmatprep.subr.mxu0 0.0
    %310 = vmatpush2.msra.mxu0 %v252
    %311 = vmatprep.subr.mxu0 0.0
    %312 = vmatpush2.msra.mxu0 %v251
    %313 = vmatprep.subr.mxu0 0.0
    %314 = vmatpush2.msra.mxu0 %v250
    %315 = vmatprep.subr.mxu0 0.0
    %316 = vmatpush2.msra.mxu0 %v249
    %317 = vmatprep.subr.mxu0 0.0
    %318 = vmatpush2.msra.mxu0 %v248
    %319 = vmatprep.subr.mxu0 0.0
    %320 = vmatpush2.msra.mxu0 %v247
    %321 = vmatprep.subr.mxu0 0.0
    %322 = vmatpush2.msra.mxu0 %v246
    %323 = vmatprep.subr.mxu0 0.0
    %324 = vmatpush2.msra.mxu0 %v245
    %325 = vmatprep.mubr.f32.mxu0 %v226
    %326 = vmatmul.mubr.f32.gmra.mxu0 %v225
    %v327 = vpop.f32.mrf.mxu0
    %v328 = vadd.f32 0.0, %v327
    %v329 = vpop.f32.mrf.mxu0
    %330 = vmatprep.mubr.f32.mxu0 %v228
    %331 = vmatmul.mubr.f32.gmra.mxu0 %v227
    %v332 = vpop.f32.mrf.mxu0
    %v333 = vadd.f32 0.0, %v332
    %v334 = vpop.f32.mrf.mxu0
    %335 = vdwg.mxu0
    %336 = vst.msk [vmem:[#allocation2] sm:$0xff] %vm28, %v328
    %337 = vst.msk [vmem:[#allocation2 + $0x8] sm:$0xff] %vm28, %v333
    // Predicated region
    $region18: #{fused_swiglu_forward.1} parent=1 // pred_check
      _
    $region19: #{fused_swiglu_forward.1} parent=1 // pred_check_branch
      %339 = sbr.rel (0) target = $region21
    $region20: #{fused_swiglu_forward.1} parent=1 // pred_region
      %s341 = ssub.s32 256, 256
      %342 = vsyncadd [#allocation3], %s341
      %s343 = sshll.u32 [#allocation2], 4
      %s344 = int_to_ptr.vmem [resolvable:$true] %s343
      %349 = dma.vmem_to_hbm [thread:$0]  %s344, 256, %s4, [#allocation3], 128, 128, 8
    $region21: #{fused_swiglu_forward.1} parent=1 // pred_fallthru
      _
    // Predicated region
    $region22: #{fused_swiglu_forward.1} parent=1 // pred_check
      _
    $region23: #{fused_swiglu_forward.1} parent=1 // pred_check_branch
      %351 = sbr.rel (0) target = $region25
    $region24: #{fused_swiglu_forward.1} parent=1 // pred_region
      %352 = dma.done [#allocation3], 256
    $region25: #{fused_swiglu_forward.1} parent=1 // pred_fallthru
      _
    %353 = vsyncpa [#allocation3], 1

</llo_original>
